<compile_context>
chip_gen: v7x
topology: tpu7x:2x2x1
jax: 0.10.0
libtpu: 0.0.40
codegen_flags: <defaults>
</compile_context>

<pallas_src>
import numpy as np
import jax
import jax.numpy as jnp
from jax.experimental import pallas as pl
from jax.experimental.pallas import tpu as pltpu

_LANES = 128


def _round_up(x, m):
    return ((x + m - 1) // m) * m


def _num_tensorcores():
    """1 TensorCore on v5e/v6e, 2 on v7x.  Fallback: 1 (always correct)."""
    try:
        kind = jax.devices()[0].device_kind.lower()
        if "v7" in kind or "7x" in kind:
            return 2
    except Exception:
        pass
    return 1


def _tile_rows(n, c, dtype, max_tile_rows, tile_budget_bytes):
    """Row-tile sized from a per-buffer VMEM budget, rounded to sublane packing."""
    itemsize = jnp.dtype(dtype).itemsize
    packing = 8 * max(1, 4 // itemsize)                 # 8 f32 / 16 bf16 / 32 int8
    lanes = _round_up(c, _LANES)                        # VMEM lane layout
    rows_budget = max(packing,
                      (tile_budget_bytes // (lanes * itemsize)) // packing * packing)
    tile = min(_round_up(max(n, 1), packing), rows_budget, max_tile_rows)
    return _round_up(tile, packing)


# ---------------------------------------------------------------------------
# Fused kernel:
#   - weighted CE partial sums over a row tile (lane-partial [1, C] accumulators)
#   - on the last inner step of split 0: matched-box L1 + GIoU sums ([4, Mpad])
#   - per-split output row [1, 1, 128]: lanes 0..3 = nll_sum, w_sum, l1_sum, giou_sum
# ---------------------------------------------------------------------------
def _make_fused_kernel(n_rows, n_steps, tile_n):
    def kernel(logits_ref, tgt_ref, w_ref, sbox_ref, tbox_ref, bmask_ref,
               out_ref, nll_acc, w_acc):
        split = pl.program_id(0)
        step = pl.program_id(1)
        last = pl.num_programs(1) - 1

        @pl.when(step == 0)
        def _init():
            nll_acc[...] = jnp.zeros_like(nll_acc)
            w_acc[...] = jnp.zeros_like(w_acc)

        # ---- weighted cross entropy on this row tile (model dtype in, f32 math) ----
        logits = logits_ref[...].astype(jnp.float32)           # [TN, C]
        tgt = tgt_ref[...]                                      # [TN, 1] int32
        w = w_ref[...]                                          # [1, C]  f32
        tn, c = logits.shape

        # row validity for the (possibly partial / clamped) tail block
        row_start = (split * n_steps + step) * tile_n
        row_ids = jax.lax.broadcasted_iota(jnp.int32, (tn, 1), 0) + row_start
        valid = row_ids < n_rows                                # [TN, 1] bool
        logits = jnp.where(valid, logits, 0.0)                  # sanitize OOB garbage

        class_ids = jax.lax.broadcasted_iota(jnp.int32, (tn, c), 1)
        sel = jnp.logical_and(class_ids == tgt, valid)          # one-hot of valid rows

        m = jnp.max(logits, axis=-1, keepdims=True)
        lse = m + jnp.log(jnp.sum(jnp.exp(logits - m), axis=-1, keepdims=True))

        # lane-partial accumulation: reduce over rows only; cross-lane reduce once at end
        nll_acc[...] += jnp.sum(jnp.where(sel, w * (lse - logits), 0.0),
                                axis=0, keepdims=True)
        w_acc[...] += jnp.sum(jnp.where(sel, w, 0.0), axis=0, keepdims=True)

        # ---- finalize: lane-dense writeback of the CE partial sums ----
        @pl.when(step == last)
        def _write():
            lane = jax.lax.broadcasted_iota(jnp.int32, (1, 1, _LANES), 2)
            out_ref[...] = (jnp.where(lane == 0, jnp.sum(nll_acc[...]), 0.0)
                            + jnp.where(lane == 1, jnp.sum(w_acc[...]), 0.0))

        # ---- box epilogue: only split 0 computes it (tiny, lane-dense [4, Mpad]) ----
        @pl.when(jnp.logical_and(step == last, split == 0))
        def _box():
            s = sbox_ref[...]        # [4, Mp] rows: xc, yc, w, h ; lane = box index
            t = tbox_ref[...]
            msk = bmask_ref[...]     # [1, Mp] 1.0 for real matched boxes, 0.0 for pad

            l1 = jnp.sum(jnp.abs(s - t) * msk)

            sx1 = s[0:1] - 0.5 * s[2:3]; sy1 = s[1:2] - 0.5 * s[3:4]
            sx2 = s[0:1] + 0.5 * s[2:3]; sy2 = s[1:2] + 0.5 * s[3:4]
            tx1 = t[0:1] - 0.5 * t[2:3]; ty1 = t[1:2] - 0.5 * t[3:4]
            tx2 = t[0:1] + 0.5 * t[2:3]; ty2 = t[1:2] + 0.5 * t[3:4]
            area_s = (sx2 - sx1) * (sy2 - sy1)
            area_t = (tx2 - tx1) * (ty2 - ty1)
            iw = jnp.maximum(jnp.minimum(sx2, tx2) - jnp.maximum(sx1, tx1), 0.0)
            ih = jnp.maximum(jnp.minimum(sy2, ty2) - jnp.maximum(sy1, ty1), 0.0)
            inter = iw * ih
            union = area_s + area_t - inter
            iou = inter / jnp.maximum(union, 1e-9)              # exact, clamped
            cw = jnp.maximum(sx2, tx2) - jnp.minimum(sx1, tx1)
            ch = jnp.maximum(sy2, ty2) - jnp.minimum(sy1, ty1)
            area_c = jnp.maximum(cw, 0.0) * jnp.maximum(ch, 0.0)
            giou = iou - (area_c - union) / jnp.maximum(area_c, 1e-9)
            giou_l = jnp.sum((1.0 - giou) * msk)

            lane = jax.lax.broadcasted_iota(jnp.int32, (1, 1, _LANES), 2)
            out_ref[...] = (out_ref[...]
                            + jnp.where(lane == 2, l1, 0.0)
                            + jnp.where(lane == 3, giou_l, 0.0))

    return kernel


def detr_fused_losses(logits2d, target_classes, class_weight, matched_pred, matched_tgt,
                      *, n_splits=None, max_tile_rows=4096, tile_budget_bytes=4 << 20):
    """Returns (nll_sum, weight_sum, l1_sum, giou_sum) as f32 scalars."""
    n, c = logits2d.shape
    m = matched_pred.shape[0]
    dt = logits2d.dtype

    if n_splits is None:
        n_splits = _num_tensorcores()

    tile_n = _tile_rows(n, c, dt, max_tile_rows, tile_budget_bytes)
    total_tiles = pl.cdiv(n, tile_n)
    n_splits = max(1, min(n_splits, total_tiles))
    n_steps = pl.cdiv(total_tiles, n_splits)

    # Raw logits go straight in (no padded copy).  Targets/weights are tiny.
    tgt2d = target_classes.astype(jnp.int32).reshape(n, 1)
    w2d = class_weight.astype(jnp.float32).reshape(1, c)

    # ---- boxes: transposed lane-dense [4, Mpad]; unit-box pad keeps GIoU finite ----
    m_pad = max(_LANES, _round_up(max(m, 1), _LANES))
    unit = jnp.array([0.5, 0.5, 1.0, 1.0], jnp.float32).reshape(4, 1)
    sbox = jnp.broadcast_to(unit, (4, m_pad))
    tbox = jnp.broadcast_to(unit, (4, m_pad))
    bmask = jnp.zeros((1, m_pad), jnp.float32)
    if m > 0:
        sbox = sbox.at[:, :m].set(matched_pred.astype(jnp.float32).T)
        tbox = tbox.at[:, :m].set(matched_tgt.astype(jnp.float32).T)
        bmask = bmask.at[0, :m].set(1.0)

    def row_map(s, i):
        blk = s * n_steps + i
        # clamp so a fully-out-of-range block (splits * steps overshoot) re-reads a
        # valid tile; the kernel's row mask (based on program ids) zeroes it exactly.
        return (jnp.minimum(blk, total_tiles - 1), 0)

    def full0(s, i):
        return (0, 0)

    kernel = _make_fused_kernel(n, n_steps, tile_n)

    out = pl.pallas_call(
        kernel,
        out_shape=jax.ShapeDtypeStruct((n_splits, 1, _LANES), jnp.float32),
        grid_spec=pltpu.PrefetchScalarGridSpec(
            num_scalar_prefetch=0,
            grid=(n_splits, n_steps),
            in_specs=[
                pl.BlockSpec((tile_n, c), row_map),    # raw logits (model dtype)
                pl.BlockSpec((tile_n, 1), row_map),    # targets
                pl.BlockSpec((1, c), full0),           # class weights
                pl.BlockSpec((4, m_pad), full0),       # matched pred boxes [4, Mp]
                pl.BlockSpec((4, m_pad), full0),       # matched tgt  boxes [4, Mp]
                pl.BlockSpec((1, m_pad), full0),       # box validity mask
            ],
            out_specs=pl.BlockSpec((1, 1, _LANES), lambda s, i: (s, 0, 0)),
            scratch_shapes=[pltpu.VMEM((1, c), jnp.float32),   # lane-partial nll acc
                            pltpu.VMEM((1, c), jnp.float32)],  # lane-partial w acc
        ),
        compiler_params=pltpu.CompilerParams(
            dimension_semantics=("parallel", "arbitrary"),
            vmem_limit_bytes=32 << 20),
    )(logits2d, tgt2d, w2d, sbox, tbox, bmask)

    sums = jnp.sum(out[:, 0, :], axis=0)   # combine per-split partial sums
    return sums[0], sums[1], sums[2], sums[3]


# ---------------------------------------------------------------------------
# DetrCriterion forward (losses = ["labels", "boxes"], no aux outputs)
# ---------------------------------------------------------------------------
class DetrCriterionJax:
    def __init__(self, loss_ce_weight, loss_boxes_weight, loss_giou_weight,
                 eos_coef, aux_loss_stage, losses):
        self.eos_coef = eos_coef
        self.losses = losses
        lw = {"loss_ce": loss_ce_weight,
              "loss_bbox": loss_boxes_weight,
              "loss_giou": loss_giou_weight}
        if aux_loss_stage > 0:
            aux = {}
            for i in range(aux_loss_stage - 1):
                aux.update({k + f"_{i}": v for k, v in lw.items()})
            lw.update(aux)
        self.loss_weights = lw

    def forward(self, m_outputs, target_labels, target_boxes, indices):
        """m_outputs: dict with 'pred_logits' [B,Q,C] and 'pred_boxes' [B,Q,4].
        target_labels / target_boxes: per-batch numpy arrays (static shapes).
        indices: list of (src_idx, tgt_idx) numpy int arrays per batch element."""
        pred_logits = m_outputs["pred_logits"]
        pred_boxes = m_outputs["pred_boxes"]
        B, Q, C = pred_logits.shape
        background = C - 1
        total_tgt = sum(len(t) for t in target_labels)
        num_boxes = float(max(total_tgt, 1))

        # ---- host-side flatten of static matcher indices: 1 scatter + 1 gather ----
        flat_src, flat_lbl, flat_tbox = [], [], []
        for b, (src, tgt) in enumerate(indices):
            src = np.asarray(src, np.int32)
            tgt = np.asarray(tgt, np.int32)
            flat_src.append(b * Q + src)
            flat_lbl.append(np.asarray(target_labels[b], np.int32)[tgt])
            flat_tbox.append(np.asarray(target_boxes[b], np.float32)[tgt])
        flat_src = (np.concatenate(flat_src) if flat_src else np.zeros((0,), np.int32))
        flat_lbl = (np.concatenate(flat_lbl) if flat_lbl else np.zeros((0,), np.int32))
        flat_tbox = (np.concatenate(flat_tbox, axis=0) if flat_tbox
                     else np.zeros((0, 4), np.float32))

        target_classes = jnp.full((B * Q,), background, jnp.int32)
        if flat_src.size:
            target_classes = target_classes.at[flat_src].set(jnp.asarray(flat_lbl))
        matched_pred = pred_boxes.reshape(B * Q, 4)[flat_src]       # single gather
        matched_tgt = jnp.asarray(flat_tbox, jnp.float32)

        empty_weight = jnp.ones((C,), jnp.float32).at[background].set(self.eos_coef)

        nll_sum, w_sum, l1_sum, giou_sum = detr_fused_losses(
            pred_logits.reshape(B * Q, C), target_classes, empty_weight,
            matched_pred, matched_tgt)

        losses = {}
        if "labels" in self.losses:
            losses["loss_ce"] = nll_sum / w_sum
        if "boxes" in self.losses and total_tgt > 0:
            losses["loss_bbox"] = l1_sum / num_boxes
            losses["loss_giou"] = giou_sum / num_boxes
        total_loss = sum(losses[k] * self.loss_weights[k] for k in losses)
        return total_loss, losses


# ---------------------------------------------------------------------------
# Pure-numpy reference for a sanity check
# ---------------------------------------------------------------------------
def _reference(pred_logits, pred_boxes, target_labels, target_boxes, indices,
               eos_coef, w_ce, w_bbox, w_giou):
    B, Q, C = pred_logits.shape
    bg = C - 1
    tc = np.full((B, Q), bg, np.int64)
    mp, mt = [], []
    for b, (src, tgt) in enumerate(indices):
        tc[b, src] = np.asarray(target_labels[b])[tgt]
        mp.append(np.asarray(pred_boxes)[b, src])
        mt.append(np.asarray(target_boxes[b])[tgt])
    mp, mt = np.concatenate(mp), np.concatenate(mt)
    num_boxes = float(max(sum(len(t) for t in target_labels), 1))
    ew = np.ones(C, np.float32); ew[bg] = eos_coef
    lg = np.asarray(pred_logits).reshape(-1, C).astype(np.float64)
    t = tc.reshape(-1)
    lse = np.log(np.exp(lg - lg.max(-1, keepdims=True)).sum(-1)) + lg.max(-1)
    nll = lse - lg[np.arange(len(t)), t]
    w = ew[t]
    loss_ce = (w * nll).sum() / w.sum()
    loss_bbox = np.abs(mp - mt).sum() / num_boxes

    def xyxy(b):
        return np.stack([b[:, 0] - b[:, 2] / 2, b[:, 1] - b[:, 3] / 2,
                         b[:, 0] + b[:, 2] / 2, b[:, 1] + b[:, 3] / 2], -1)
    p, g = xyxy(mp), xyxy(mt)
    ap = (p[:, 2] - p[:, 0]) * (p[:, 3] - p[:, 1])
    ag = (g[:, 2] - g[:, 0]) * (g[:, 3] - g[:, 1])
    iw = np.clip(np.minimum(p[:, 2], g[:, 2]) - np.maximum(p[:, 0], g[:, 0]), 0, None)
    ih = np.clip(np.minimum(p[:, 3], g[:, 3]) - np.maximum(p[:, 1], g[:, 1]), 0, None)
    inter = iw * ih
    union = ap + ag - inter
    iou = inter / union
    cw = np.maximum(p[:, 2], g[:, 2]) - np.minimum(p[:, 0], g[:, 0])
    ch = np.maximum(p[:, 3], g[:, 3]) - np.minimum(p[:, 1], g[:, 1])
    ac = cw * ch
    giou = iou - (ac - union) / ac
    loss_giou = (1 - giou).sum() / num_boxes
    total = w_ce * loss_ce + w_bbox * loss_bbox + w_giou * loss_giou
    return total, loss_ce, loss_bbox, loss_giou


if __name__ == "__main__":
    key = jax.random.PRNGKey(0)
    B, Q, NUM_CLASSES = 2, 8, 6
    C = NUM_CLASSES + 1  # + background

    k1, k2, k3 = jax.random.split(key, 3)
    pred_logits = jax.random.normal(k1, (B, Q, C), dtype=jnp.float32)
    pred_boxes = jax.nn.sigmoid(jax.random.normal(k2, (B, Q, 4), dtype=jnp.float32))

    # synthetic targets (xcyc relative) and matcher output indices
    target_labels = [np.array([0, 2, 5]), np.array([1, 3])]
    tb = np.array(jax.random.uniform(k3, (5, 4), minval=0.1, maxval=0.4))  # writable copy
    tb[:, 0:2] += 0.3  # centers in [0.4, 0.7]
    target_boxes = [tb[:3], tb[3:]]
    indices = [(np.array([1, 4, 6]), np.array([0, 1, 2])),
               (np.array([0, 5]), np.array([1, 0]))]

    crit = DetrCriterionJax(loss_ce_weight=1.0, loss_boxes_weight=5.0,
                            loss_giou_weight=2.0, eos_coef=0.1,
                            aux_loss_stage=0, losses=["labels", "boxes"])

    total, losses = crit.forward(
        {"pred_logits": pred_logits, "pred_boxes": pred_boxes},
        target_labels, target_boxes, indices)
    total = jax.block_until_ready(total)

    ref_total, ref_ce, ref_bbox, ref_giou = _reference(
        pred_logits, pred_boxes, target_labels, target_boxes, indices,
        eos_coef=0.1, w_ce=1.0, w_bbox=5.0, w_giou=2.0)

    assert np.allclose(float(losses["loss_ce"]), ref_ce, rtol=1e-4, atol=1e-5)
    assert np.allclose(float(losses["loss_bbox"]), ref_bbox, rtol=1e-4, atol=1e-5)
    # exact division in the GIoU path now -> tight tolerance
    assert np.allclose(float(losses["loss_giou"]), ref_giou, rtol=1e-4, atol=1e-5)
    assert np.allclose(float(total), ref_total, rtol=1e-4, atol=1e-4)

    print("KERNEL_OK")
</pallas_src>

<mosaic_0001>
module attributes {stable_mosaic.version = 11 : i64} {
  func.func @kernel(%arg0: i32, %arg1: i32, %arg2: memref<16x7xf32, #tpu.memory_space<vmem>>, %arg3: memref<16x1xi32, #tpu.memory_space<vmem>>, %arg4: memref<1x7xf32, #tpu.memory_space<vmem>>, %arg5: memref<4x128xf32, #tpu.memory_space<vmem>>, %arg6: memref<4x128xf32, #tpu.memory_space<vmem>>, %arg7: memref<1x128xf32, #tpu.memory_space<vmem>>, %arg8: memref<1x1x128xf32, #tpu.memory_space<vmem>>, %arg9: memref<1x7xf32, #tpu.memory_space<vmem>>, %arg10: memref<1x7xf32, #tpu.memory_space<vmem>>) attributes {dimension_semantics = [#tpu.dimension_semantics<parallel>, #tpu.dimension_semantics<arbitrary>], iteration_bounds = array<i64: 1, 1>, scalar_prefetch = 0 : i64, scratch_operands = 2 : i64, tpu.core_type = #tpu.core_type<tc>, window_params = [{transform_indices = @transform_0, window_bounds = array<i64: 16, 7>}, {transform_indices = @transform_1, window_bounds = array<i64: 16, 1>}, {pipeline_mode = #tpu.pipeline_mode<synchronous>, transform_indices = @transform_2, window_bounds = array<i64: 1, 7>}, {pipeline_mode = #tpu.pipeline_mode<synchronous>, transform_indices = @transform_3, window_bounds = array<i64: 4, 128>}, {pipeline_mode = #tpu.pipeline_mode<synchronous>, transform_indices = @transform_4, window_bounds = array<i64: 4, 128>}, {pipeline_mode = #tpu.pipeline_mode<synchronous>, transform_indices = @transform_5, window_bounds = array<i64: 1, 128>}, {transform_indices = @transform_6, window_bounds = array<i64: 1, 1, 128>}]} {
    %c0_i32 = arith.constant 0 : i32
    %0 = arith.cmpi eq, %arg1, %c0_i32 : i32
    %1 = arith.extui %0 : i1 to i32
    %c0_i32_0 = arith.constant 0 : i32
    %2 = arith.cmpi ne, %1, %c0_i32_0 : i32
    scf.if %2 {
      %cst_26 = arith.constant 0.000000e+00 : f32
      %60 = vector.broadcast %cst_26 : f32 to vector<1x7xf32>
      %c0_27 = arith.constant 0 : index
      %c0_28 = arith.constant 0 : index
      %61 = vector.load %arg9[%c0_27, %c0_28] : memref<1x7xf32, #tpu.memory_space<vmem>>, vector<1x7xf32>
      tpu.vector_store %arg9[%c0_27, %c0_28], %60 {strides = array<i32>} : memref<1x7xf32, #tpu.memory_space<vmem>>, vector<1x7xf32>,
      %cst_29 = arith.constant 0.000000e+00 : f32
      %62 = vector.broadcast %cst_29 : f32 to vector<1x7xf32>
      %c0_30 = arith.constant 0 : index
      %c0_31 = arith.constant 0 : index
      %63 = vector.load %arg10[%c0_30, %c0_31] : memref<1x7xf32, #tpu.memory_space<vmem>>, vector<1x7xf32>
      tpu.vector_store %arg10[%c0_30, %c0_31], %62 {strides = array<i32>} : memref<1x7xf32, #tpu.memory_space<vmem>>, vector<1x7xf32>,
    } else {
    }
    %c0 = arith.constant 0 : index
    %c0_1 = arith.constant 0 : index
    %3 = vector.load %arg2[%c0, %c0_1] : memref<16x7xf32, #tpu.memory_space<vmem>>, vector<16x7xf32>
    %c0_2 = arith.constant 0 : index
    %c0_3 = arith.constant 0 : index
    %4 = vector.load %arg3[%c0_2, %c0_3] : memref<16x1xi32, #tpu.memory_space<vmem>>, vector<16x1xi32>
    %c0_4 = arith.constant 0 : index
    %c0_5 = arith.constant 0 : index
    %5 = vector.load %arg4[%c0_4, %c0_5] : memref<1x7xf32, #tpu.memory_space<vmem>>, vector<1x7xf32>
    %c1_i32 = arith.constant 1 : i32
    %6 = arith.muli %arg0, %c1_i32 : i32
    %7 = arith.addi %6, %arg1 : i32
    %c16_i32 = arith.constant 16 : i32
    %8 = arith.muli %7, %c16_i32 : i32
    %9 = tpu.iota {dimensions = array<i32: 0>} : vector<16x1xi32>
    %10 = vector.broadcast %8 : i32 to vector<16x1xi32>
    %11 = arith.addi %9, %10 : vector<16x1xi32>
    %c16_i32_6 = arith.constant 16 : i32
    %12 = vector.broadcast %c16_i32_6 : i32 to vector<16x1xi32>
    %13 = arith.cmpi slt, %11, %12 : vector<16x1xi32>
    %cst = arith.constant 0.000000e+00 : f32
    %14 = vector.shape_cast %13 : vector<16x1xi1> to vector<16x1xi1>
    %15 = vector.broadcast %14 : vector<16x1xi1> to vector<16x7xi1>
    %16 = vector.broadcast %cst : f32 to vector<16x7xf32>
    %17 = arith.select %15, %3, %16 : vector<16x7xi1>, vector<16x7xf32>
    %18 = tpu.iota {dimensions = array<i32: 1>} : vector<16x7xi32>
    %19 = vector.broadcast %4 : vector<16x1xi32> to vector<16x7xi32>
    %20 = arith.cmpi eq, %18, %19 : vector<16x7xi32>
    %21 = vector.broadcast %13 : vector<16x1xi1> to vector<16x7xi1>
    %22 = arith.andi %20, %21 : vector<16x7xi1>
    %cst_7 = arith.constant dense<0xFF800000> : vector<16xf32>
    %23 = vector.multi_reduction <maximumf>, %17, %cst_7 [1] : vector<16x7xf32> to vector<16xf32>
    %24 = vector.shape_cast %23 : vector<16xf32> to vector<16x1xf32>
    %25 = vector.broadcast %24 : vector<16x1xf32> to vector<16x7xf32>
    %26 = arith.subf %17, %25 : vector<16x7xf32>
    %27 = math.exp %26 : vector<16x7xf32>
    %cst_8 = arith.constant dense<0.000000e+00> : vector<16xf32>
    %28 = vector.multi_reduction <add>, %27, %cst_8 [1] : vector<16x7xf32> to vector<16xf32>
    %29 = vector.shape_cast %28 : vector<16xf32> to vector<16x1xf32>
    %30 = math.log %29 : vector<16x1xf32>
    %31 = arith.addf %24, %30 : vector<16x1xf32>
    %c0_9 = arith.constant 0 : index
    %c0_10 = arith.constant 0 : index
    %32 = vector.load %arg9[%c0_9, %c0_10] : memref<1x7xf32, #tpu.memory_space<vmem>>, vector<1x7xf32>
    %33 = vector.broadcast %31 : vector<16x1xf32> to vector<16x7xf32>
    %34 = arith.subf %33, %17 : vector<16x7xf32>
    %35 = vector.broadcast %5 : vector<1x7xf32> to vector<16x7xf32>
    %36 = arith.mulf %35, %34 : vector<16x7xf32>
    %cst_11 = arith.constant 0.000000e+00 : f32
    %37 = vector.broadcast %cst_11 : f32 to vector<16x7xf32>
    %38 = arith.select %22, %36, %37 : vector<16x7xi1>, vector<16x7xf32>
    %cst_12 = arith.constant dense<0.000000e+00> : vector<7xf32>
    %39 = vector.multi_reduction <add>, %38, %cst_12 [0] : vector<16x7xf32> to vector<7xf32>
    %40 = vector.shape_cast %39 : vector<7xf32> to vector<1x7xf32>
    %41 = arith.addf %32, %40 : vector<1x7xf32>
    %c0_13 = arith.constant 0 : index
    %c0_14 = arith.constant 0 : index
    %42 = vector.load %arg9[%c0_13, %c0_14] : memref<1x7xf32, #tpu.memory_space<vmem>>, vector<1x7xf32>
    tpu.vector_store %arg9[%c0_13, %c0_14], %41 {strides = array<i32>} : memref<1x7xf32, #tpu.memory_space<vmem>>, vector<1x7xf32>,
    %c0_15 = arith.constant 0 : index
    %c0_16 = arith.constant 0 : index
    %43 = vector.load %arg10[%c0_15, %c0_16] : memref<1x7xf32, #tpu.memory_space<vmem>>, vector<1x7xf32>
    %cst_17 = arith.constant 0.000000e+00 : f32
    %44 = vector.shape_cast %5 : vector<1x7xf32> to vector<1x7xf32>
    %45 = vector.broadcast %44 : vector<1x7xf32> to vector<16x7xf32>
    %46 = vector.broadcast %cst_17 : f32 to vector<16x7xf32>
    %47 = arith.select %22, %45, %46 : vector<16x7xi1>, vector<16x7xf32>
    %cst_18 = arith.constant dense<0.000000e+00> : vector<7xf32>
    %48 = vector.multi_reduction <add>, %47, %cst_18 [0] : vector<16x7xf32> to vector<7xf32>
    %49 = vector.shape_cast %48 : vector<7xf32> to vector<1x7xf32>
    %50 = arith.addf %43, %49 : vector<1x7xf32>
    %c0_19 = arith.constant 0 : index
    %c0_20 = arith.constant 0 : index
    %51 = vector.load %arg10[%c0_19, %c0_20] : memref<1x7xf32, #tpu.memory_space<vmem>>, vector<1x7xf32>
    tpu.vector_store %arg10[%c0_19, %c0_20], %50 {strides = array<i32>} : memref<1x7xf32, #tpu.memory_space<vmem>>, vector<1x7xf32>,
    %c0_i32_21 = arith.constant 0 : i32
    %52 = arith.cmpi eq, %arg1, %c0_i32_21 : i32
    %53 = arith.extui %52 : i1 to i32
    %c0_i32_22 = arith.constant 0 : i32
    %54 = arith.cmpi ne, %53, %c0_i32_22 : i32
    scf.if %54 {
      %60 = tpu.iota {dimensions = array<i32: 2>} : vector<1x1x128xi32>
      %c0_i32_26 = arith.constant 0 : i32
      %61 = vector.broadcast %c0_i32_26 : i32 to vector<1x1x128xi32>
      %62 = arith.cmpi eq, %60, %61 : vector<1x1x128xi32>
      %c0_27 = arith.constant 0 : index
      %c0_28 = arith.constant 0 : index
      %63 = vector.load %arg9[%c0_27, %c0_28] : memref<1x7xf32, #tpu.memory_space<vmem>>, vector<1x7xf32>
      %64 = vector.shape_cast %63 : vector<1x7xf32> to vector<1x1x7xf32>
      %cst_29 = arith.constant dense<0.000000e+00> : vector<1xf32>
      %65 = vector.multi_reduction <add>, %64, %cst_29 [1, 2] : vector<1x1x7xf32> to vector<1xf32>
      %66 = vector.shape_cast %65 : vector<1xf32> to vector<1x1x1xf32>
      %67 = vector.extract %66[0, 0, 0] : f32 from vector<1x1x1xf32>
      %cst_30 = arith.constant 0.000000e+00 : f32
      %68 = vector.broadcast %67 : f32 to vector<1x1x128xf32>
      %69 = vector.broadcast %cst_30 : f32 to vector<1x1x128xf32>
      %70 = arith.select %62, %68, %69 : vector<1x1x128xi1>, vector<1x1x128xf32>
      %c1_i32_31 = arith.constant 1 : i32
      %71 = vector.broadcast %c1_i32_31 : i32 to vector<1x1x128xi32>
      %72 = arith.cmpi eq, %60, %71 : vector<1x1x128xi32>
      %c0_32 = arith.constant 0 : index
      %c0_33 = arith.constant 0 : index
      %73 = vector.load %arg10[%c0_32, %c0_33] : memref<1x7xf32, #tpu.memory_space<vmem>>, vector<1x7xf32>
      %74 = vector.shape_cast %73 : vector<1x7xf32> to vector<1x1x7xf32>
      %cst_34 = arith.constant dense<0.000000e+00> : vector<1xf32>
      %75 = vector.multi_reduction <add>, %74, %cst_34 [1, 2] : vector<1x1x7xf32> to vector<1xf32>
      %76 = vector.shape_cast %75 : vector<1xf32> to vector<1x1x1xf32>
      %77 = vector.extract %76[0, 0, 0] : f32 from vector<1x1x1xf32>
      %cst_35 = arith.constant 0.000000e+00 : f32
      %78 = vector.broadcast %77 : f32 to vector<1x1x128xf32>
      %79 = vector.broadcast %cst_35 : f32 to vector<1x1x128xf32>
      %80 = arith.select %72, %78, %79 : vector<1x1x128xi1>, vector<1x1x128xf32>
      %81 = arith.addf %70, %80 : vector<1x1x128xf32>
      %c0_36 = arith.constant 0 : index
      %c0_37 = arith.constant 0 : index
      %c0_38 = arith.constant 0 : index
      %82 = vector.load %arg8[%c0_36, %c0_37, %c0_38] : memref<1x1x128xf32, #tpu.memory_space<vmem>>, vector<1x1x128xf32>
      tpu.vector_store %arg8[%c0_36, %c0_37, %c0_38], %81 {strides = array<i32>} : memref<1x1x128xf32, #tpu.memory_space<vmem>>, vector<1x1x128xf32>,
    } else {
    }
    %c0_i32_23 = arith.constant 0 : i32
    %55 = arith.cmpi eq, %arg1, %c0_i32_23 : i32
    %c0_i32_24 = arith.constant 0 : i32
    %56 = arith.cmpi eq, %arg0, %c0_i32_24 : i32
    %57 = arith.andi %55, %56 : i1
    %58 = arith.extui %57 : i1 to i32
    %c0_i32_25 = arith.constant 0 : i32
    %59 = arith.cmpi ne, %58, %c0_i32_25 : i32
    scf.if %59 {
      %c0_26 = arith.constant 0 : index
      %c0_27 = arith.constant 0 : index
      %60 = vector.load %arg5[%c0_26, %c0_27] : memref<4x128xf32, #tpu.memory_space<vmem>>, vector<4x128xf32>
      %c0_28 = arith.constant 0 : index
      %c0_29 = arith.constant 0 : index
      %61 = vector.load %arg6[%c0_28, %c0_29] : memref<4x128xf32, #tpu.memory_space<vmem>>, vector<4x128xf32>
      %c0_30 = arith.constant 0 : index
      %c0_31 = arith.constant 0 : index
      %62 = vector.load %arg7[%c0_30, %c0_31] : memref<1x128xf32, #tpu.memory_space<vmem>>, vector<1x128xf32>
      %63 = arith.subf %60, %61 : vector<4x128xf32>
      %64 = math.absf %63 : vector<4x128xf32>
      %65 = vector.broadcast %62 : vector<1x128xf32> to vector<4x128xf32>
      %66 = arith.mulf %64, %65 : vector<4x128xf32>
      %67 = vector.shape_cast %66 : vector<4x128xf32> to vector<1x4x128xf32>
      %cst_32 = arith.constant dense<0.000000e+00> : vector<1xf32>
      %68 = vector.multi_reduction <add>, %67, %cst_32 [1, 2] : vector<1x4x128xf32> to vector<1xf32>
      %69 = vector.shape_cast %68 : vector<1xf32> to vector<1x1x1xf32>
      %70 = vector.extract %69[0, 0, 0] : f32 from vector<1x1x1xf32>
      %71 = vector.extract_strided_slice %60 {offsets = [0, 0], sizes = [1, 128], strides = [1, 1]} : vector<4x128xf32> to vector<1x128xf32>
      %72 = vector.extract_strided_slice %60 {offsets = [2, 0], sizes = [1, 128], strides = [1, 1]} : vector<4x128xf32> to vector<1x128xf32>
      %cst_33 = arith.constant 5.000000e-01 : f32
      %73 = vector.broadcast %cst_33 : f32 to vector<1x128xf32>
      %74 = arith.mulf %73, %72 : vector<1x128xf32>
      %75 = arith.subf %71, %74 : vector<1x128xf32>
      %76 = vector.extract_strided_slice %60 {offsets = [1, 0], sizes = [1, 128], strides = [1, 1]} : vector<4x128xf32> to vector<1x128xf32>
      %77 = vector.extract_strided_slice %60 {offsets = [3, 0], sizes = [1, 128], strides = [1, 1]} : vector<4x128xf32> to vector<1x128xf32>
      %cst_34 = arith.constant 5.000000e-01 : f32
      %78 = vector.broadcast %cst_34 : f32 to vector<1x128xf32>
      %79 = arith.mulf %78, %77 : vector<1x128xf32>
      %80 = arith.subf %76, %79 : vector<1x128xf32>
      %81 = vector.extract_strided_slice %60 {offsets = [0, 0], sizes = [1, 128], strides = [1, 1]} : vector<4x128xf32> to vector<1x128xf32>
      %82 = vector.extract_strided_slice %60 {offsets = [2, 0], sizes = [1, 128], strides = [1, 1]} : vector<4x128xf32> to vector<1x128xf32>
      %cst_35 = arith.constant 5.000000e-01 : f32
      %83 = vector.broadcast %cst_35 : f32 to vector<1x128xf32>
      %84 = arith.mulf %83, %82 : vector<1x128xf32>
      %85 = arith.addf %81, %84 : vector<1x128xf32>
      %86 = vector.extract_strided_slice %60 {offsets = [1, 0], sizes = [1, 128], strides = [1, 1]} : vector<4x128xf32> to vector<1x128xf32>
      %87 = vector.extract_strided_slice %60 {offsets = [3, 0], sizes = [1, 128], strides = [1, 1]} : vector<4x128xf32> to vector<1x128xf32>
      %cst_36 = arith.constant 5.000000e-01 : f32
      %88 = vector.broadcast %cst_36 : f32 to vector<1x128xf32>
      %89 = arith.mulf %88, %87 : vector<1x128xf32>
      %90 = arith.addf %86, %89 : vector<1x128xf32>
      %91 = vector.extract_strided_slice %61 {offsets = [0, 0], sizes = [1, 128], strides = [1, 1]} : vector<4x128xf32> to vector<1x128xf32>
      %92 = vector.extract_strided_slice %61 {offsets = [2, 0], sizes = [1, 128], strides = [1, 1]} : vector<4x128xf32> to vector<1x128xf32>
      %cst_37 = arith.constant 5.000000e-01 : f32
      %93 = vector.broadcast %cst_37 : f32 to vector<1x128xf32>
      %94 = arith.mulf %93, %92 : vector<1x128xf32>
      %95 = arith.subf %91, %94 : vector<1x128xf32>
      %96 = vector.extract_strided_slice %61 {offsets = [1, 0], sizes = [1, 128], strides = [1, 1]} : vector<4x128xf32> to vector<1x128xf32>
      %97 = vector.extract_strided_slice %61 {offsets = [3, 0], sizes = [1, 128], strides = [1, 1]} : vector<4x128xf32> to vector<1x128xf32>
      %cst_38 = arith.constant 5.000000e-01 : f32
      %98 = vector.broadcast %cst_38 : f32 to vector<1x128xf32>
      %99 = arith.mulf %98, %97 : vector<1x128xf32>
      %100 = arith.subf %96, %99 : vector<1x128xf32>
      %101 = vector.extract_strided_slice %61 {offsets = [0, 0], sizes = [1, 128], strides = [1, 1]} : vector<4x128xf32> to vector<1x128xf32>
      %102 = vector.extract_strided_slice %61 {offsets = [2, 0], sizes = [1, 128], strides = [1, 1]} : vector<4x128xf32> to vector<1x128xf32>
      %cst_39 = arith.constant 5.000000e-01 : f32
      %103 = vector.broadcast %cst_39 : f32 to vector<1x128xf32>
      %104 = arith.mulf %103, %102 : vector<1x128xf32>
      %105 = arith.addf %101, %104 : vector<1x128xf32>
      %106 = vector.extract_strided_slice %61 {offsets = [1, 0], sizes = [1, 128], strides = [1, 1]} : vector<4x128xf32> to vector<1x128xf32>
      %107 = vector.extract_strided_slice %61 {offsets = [3, 0], sizes = [1, 128], strides = [1, 1]} : vector<4x128xf32> to vector<1x128xf32>
      %cst_40 = arith.constant 5.000000e-01 : f32
      %108 = vector.broadcast %cst_40 : f32 to vector<1x128xf32>
      %109 = arith.mulf %108, %107 : vector<1x128xf32>
      %110 = arith.addf %106, %109 : vector<1x128xf32>
      %111 = arith.subf %85, %75 : vector<1x128xf32>
      %112 = arith.subf %90, %80 : vector<1x128xf32>
      %113 = arith.mulf %111, %112 : vector<1x128xf32>
      %114 = arith.subf %105, %95 : vector<1x128xf32>
      %115 = arith.subf %110, %100 : vector<1x128xf32>
      %116 = arith.mulf %114, %115 : vector<1x128xf32>
      %117 = arith.minimumf %85, %105 : vector<1x128xf32>
      %118 = arith.maximumf %75, %95 : vector<1x128xf32>
      %119 = arith.subf %117, %118 : vector<1x128xf32>
      %cst_41 = arith.constant 0.000000e+00 : f32
      %120 = vector.broadcast %cst_41 : f32 to vector<1x128xf32>
      %121 = arith.maximumf %119, %120 : vector<1x128xf32>
      %122 = arith.minimumf %90, %110 : vector<1x128xf32>
      %123 = arith.maximumf %80, %100 : vector<1x128xf32>
      %124 = arith.subf %122, %123 : vector<1x128xf32>
      %cst_42 = arith.constant 0.000000e+00 : f32
      %125 = vector.broadcast %cst_42 : f32 to vector<1x128xf32>
      %126 = arith.maximumf %124, %125 : vector<1x128xf32>
      %127 = arith.mulf %121, %126 : vector<1x128xf32>
      %128 = arith.addf %113, %116 : vector<1x128xf32>
      %129 = arith.subf %128, %127 : vector<1x128xf32>
      %cst_43 = arith.constant 9.99999971E-10 : f32
      %130 = vector.broadcast %cst_43 : f32 to vector<1x128xf32>
      %131 = arith.maximumf %129, %130 : vector<1x128xf32>
      %132 = arith.divf %127, %131 : vector<1x128xf32>
      %133 = arith.maximumf %85, %105 : vector<1x128xf32>
      %134 = arith.minimumf %75, %95 : vector<1x128xf32>
      %135 = arith.subf %133, %134 : vector<1x128xf32>
      %136 = arith.maximumf %90, %110 : vector<1x128xf32>
      %137 = arith.minimumf %80, %100 : vector<1x128xf32>
      %138 = arith.subf %136, %137 : vector<1x128xf32>
      %cst_44 = arith.constant 0.000000e+00 : f32
      %139 = vector.broadcast %cst_44 : f32 to vector<1x128xf32>
      %140 = arith.maximumf %135, %139 : vector<1x128xf32>
      %cst_45 = arith.constant 0.000000e+00 : f32
      %141 = vector.broadcast %cst_45 : f32 to vector<1x128xf32>
      %142 = arith.maximumf %138, %141 : vector<1x128xf32>
      %143 = arith.mulf %140, %142 : vector<1x128xf32>
      %144 = arith.subf %143, %129 : vector<1x128xf32>
      %cst_46 = arith.constant 9.99999971E-10 : f32
      %145 = vector.broadcast %cst_46 : f32 to vector<1x128xf32>
      %146 = arith.maximumf %143, %145 : vector<1x128xf32>
      %147 = arith.divf %144, %146 : vector<1x128xf32>
      %148 = arith.subf %132, %147 : vector<1x128xf32>
      %cst_47 = arith.constant 1.000000e+00 : f32
      %149 = vector.broadcast %cst_47 : f32 to vector<1x128xf32>
      %150 = arith.subf %149, %148 : vector<1x128xf32>
      %151 = arith.mulf %150, %62 : vector<1x128xf32>
      %152 = vector.shape_cast %151 : vector<1x128xf32> to vector<1x1x128xf32>
      %cst_48 = arith.constant dense<0.000000e+00> : vector<1xf32>
      %153 = vector.multi_reduction <add>, %152, %cst_48 [1, 2] : vector<1x1x128xf32> to vector<1xf32>
      %154 = vector.shape_cast %153 : vector<1xf32> to vector<1x1x1xf32>
      %155 = vector.extract %154[0, 0, 0] : f32 from vector<1x1x1xf32>
      %156 = tpu.iota {dimensions = array<i32: 2>} : vector<1x1x128xi32>
      %c0_49 = arith.constant 0 : index
      %c0_50 = arith.constant 0 : index
      %c0_51 = arith.constant 0 : index
      %157 = vector.load %arg8[%c0_49, %c0_50, %c0_51] : memref<1x1x128xf32, #tpu.memory_space<vmem>>, vector<1x1x128xf32>
      %c2_i32 = arith.constant 2 : i32
      %158 = vector.broadcast %c2_i32 : i32 to vector<1x1x128xi32>
      %159 = arith.cmpi eq, %156, %158 : vector<1x1x128xi32>
      %cst_52 = arith.constant 0.000000e+00 : f32
      %160 = vector.broadcast %70 : f32 to vector<1x1x128xf32>
      %161 = vector.broadcast %cst_52 : f32 to vector<1x1x128xf32>
      %162 = arith.select %159, %160, %161 : vector<1x1x128xi1>, vector<1x1x128xf32>
      %163 = arith.addf %157, %162 : vector<1x1x128xf32>
      %c3_i32 = arith.constant 3 : i32
      %164 = vector.broadcast %c3_i32 : i32 to vector<1x1x128xi32>
      %165 = arith.cmpi eq, %156, %164 : vector<1x1x128xi32>
      %cst_53 = arith.constant 0.000000e+00 : f32
      %166 = vector.broadcast %155 : f32 to vector<1x1x128xf32>
      %167 = vector.broadcast %cst_53 : f32 to vector<1x1x128xf32>
      %168 = arith.select %165, %166, %167 : vector<1x1x128xi1>, vector<1x1x128xf32>
      %169 = arith.addf %163, %168 : vector<1x1x128xf32>
      %c0_54 = arith.constant 0 : index
      %c0_55 = arith.constant 0 : index
      %c0_56 = arith.constant 0 : index
      %170 = vector.load %arg8[%c0_54, %c0_55, %c0_56] : memref<1x1x128xf32, #tpu.memory_space<vmem>>, vector<1x1x128xf32>
      tpu.vector_store %arg8[%c0_54, %c0_55, %c0_56], %169 {strides = array<i32>} : memref<1x1x128xf32, #tpu.memory_space<vmem>>, vector<1x1x128xf32>,
    } else {
    }
    return
  }
  func.func @transform_0(%arg0: i32, %arg1: i32) -> (i32, i32) {
    %c1_i32 = arith.constant 1 : i32
    %0 = arith.muli %arg0, %c1_i32 : i32
    %1 = arith.addi %0, %arg1 : i32
    %c0_i32 = arith.constant 0 : i32
    %2 = arith.minsi %1, %c0_i32 : i32
    %c0_i32_0 = arith.constant 0 : i32
    %c0_i32_1 = arith.constant 0 : i32
    return %2, %c0_i32_0 : i32, i32
  }
  func.func @transform_1(%arg0: i32, %arg1: i32) -> (i32, i32) {
    %c1_i32 = arith.constant 1 : i32
    %0 = arith.muli %arg0, %c1_i32 : i32
    %1 = arith.addi %0, %arg1 : i32
    %c0_i32 = arith.constant 0 : i32
    %2 = arith.minsi %1, %c0_i32 : i32
    %c0_i32_0 = arith.constant 0 : i32
    %c0_i32_1 = arith.constant 0 : i32
    return %2, %c0_i32_0 : i32, i32
  }
  func.func @transform_2(%arg0: i32, %arg1: i32) -> (i32, i32) {
    %c0_i32 = arith.constant 0 : i32
    %c0_i32_0 = arith.constant 0 : i32
    %c0_i32_1 = arith.constant 0 : i32
    return %c0_i32, %c0_i32_0 : i32, i32
  }
  func.func @transform_3(%arg0: i32, %arg1: i32) -> (i32, i32) {
    %c0_i32 = arith.constant 0 : i32
    %c0_i32_0 = arith.constant 0 : i32
    %c0_i32_1 = arith.constant 0 : i32
    return %c0_i32, %c0_i32_0 : i32, i32
  }
  func.func @transform_4(%arg0: i32, %arg1: i32) -> (i32, i32) {
    %c0_i32 = arith.constant 0 : i32
    %c0_i32_0 = arith.constant 0 : i32
    %c0_i32_1 = arith.constant 0 : i32
    return %c0_i32, %c0_i32_0 : i32, i32
  }
  func.func @transform_5(%arg0: i32, %arg1: i32) -> (i32, i32) {
    %c0_i32 = arith.constant 0 : i32
    %c0_i32_0 = arith.constant 0 : i32
    %c0_i32_1 = arith.constant 0 : i32
    return %c0_i32, %c0_i32_0 : i32, i32
  }
  func.func @transform_6(%arg0: i32, %arg1: i32) -> (i32, i32, i32) {
    %c0_i32 = arith.constant 0 : i32
    %c0_i32_0 = arith.constant 0 : i32
    %c0_i32_1 = arith.constant 0 : i32
    return %arg0, %c0_i32, %c0_i32_0 : i32, i32, i32
  }
}

</mosaic_0001>

<llo_original>
// kernel: tpu_custom_call.1
$region0: #{tpu_custom_call.1}
  #allocation0 [shape = 'u32[]', space=smem, size = 0x4, offset = 0x4, fixed_abs, tag = 'smem constant byte address 0x4 - core index']
  #allocation1 [shape = 'u32[144,128]{1,0:T(1,128)}', space=vmem, size = 0x12000, scoped, tag = 'internal scratch']
  #allocation2 [shape = 'f32[1,7]{1,0:T(1,128)}', space=vmem, size = 0x200, scoped, tag = 'scratch operand']
  #allocation3 [shape = 'f32[1,7]{1,0:T(1,128)}', space=vmem, size = 0x200, scoped, tag = 'scratch operand']
  %s0 = inlined_call_operand.vmem [shape: f32[16,7], index: 0, kind: input, shape index: {}]
  %s1 = inlined_call_operand.vmem [shape: s32[16,1], index: 1, kind: input, shape index: {}]
  %s2 = inlined_call_operand.vmem [shape: f32[1,7], index: 2, kind: input, shape index: {}]
  %s3 = inlined_call_operand.vmem [shape: f32[4,128], index: 3, kind: input, shape index: {}]
  %s4 = inlined_call_operand.vmem [shape: f32[4,128], index: 4, kind: input, shape index: {}]
  %s5 = inlined_call_operand.vmem [shape: f32[1,128], index: 5, kind: input, shape index: {}]
  %s6 = inlined_call_operand.hbm [shape: f32[1,1,128], index: 6, kind: output, shape index: {}]
  %s7 = sld [smem:[#allocation0]]
  $region46: #{tpu_custom_call.1} parent=0
    _
  %s9 = ssub.s32 1, %s7
  %s10 = scalar_select 0, %s9, %s7
  $region1: #{tpu_custom_call.1} parent=0
    #allocation4 [shape = 'u8[512]{0}', space=vmem, size = 0x400, scoped, tag = 'output window, operand 0, single buffered']
    #allocation5 [shape = 's32[1]{0}', space=sflag, size = 0x4, scoped, tag = 'scoped memory for tpu_custom_call.1']
    %11 = vsyncpa [#allocation5], 0
    // Predicated region
    $region2: #{tpu_custom_call.1} parent=1 // pred_check
      _
    $region3: #{tpu_custom_call.1} parent=1 // pred_check_branch
      %13 = sbr.rel (0) target = $region5
    $region4: #{tpu_custom_call.1} parent=1 // pred_region
      %s14 = sadd.s32 0, 0
      %p15 = scmp.lt.s32.totalorder %s14, 0
      %s16 = scalar_select %p15, %s14, 0
      %s17 = smul.u32 2, %s16
      %p18 = scmp.lt.s32.totalorder %s17, 1
      %s19 = scalar_select %p18, %s17, 1
      %s20 = smul.addr %s19, 8
      %s21 = scalar_lea.vmem %s0, %s20
      %s22 = sadd.s32 0, 0
      %p23 = scmp.lt.s32.totalorder %s22, 0
      %s24 = scalar_select %p23, %s22, 0
      %s25 = smul.u32 2, %s24
    $region5: #{tpu_custom_call.1} parent=1 // pred_fallthru
      _
    // Predicated region
    $region6: #{tpu_custom_call.1} parent=1 // pred_check
      _
    $region7: #{tpu_custom_call.1} parent=1 // pred_check_branch
      %27 = sbr.rel (0) target = $region9
    $region8: #{tpu_custom_call.1} parent=1 // pred_region
      %s28 = sadd.s32 0, 0
      %p29 = scmp.lt.s32.totalorder %s28, 0
      %s30 = scalar_select %p29, %s28, 0
      %s31 = smul.u32 2, %s30
      %p32 = scmp.lt.s32.totalorder %s31, 1
      %s33 = scalar_select %p32, %s31, 1
      %s34 = smul.addr %s33, 8
      %s35 = scalar_lea.vmem %s1, %s34
      %s36 = sadd.s32 0, 0
      %p37 = scmp.lt.s32.totalorder %s36, 0
      %s38 = scalar_select %p37, %s36, 0
      %s39 = smul.u32 2, %s38
    $region9: #{tpu_custom_call.1} parent=1 // pred_fallthru
      _
    // Predicated region
    $region10: #{tpu_custom_call.1} parent=1 // pred_check
      _
    $region11: #{tpu_custom_call.1} parent=1 // pred_check_branch
      %41 = sbr.rel (0) target = $region13
    $region12: #{tpu_custom_call.1} parent=1 // pred_region
      _
    $region13: #{tpu_custom_call.1} parent=1 // pred_fallthru
      _
    // Predicated region
    $region14: #{tpu_custom_call.1} parent=1 // pred_check
      _
    $region15: #{tpu_custom_call.1} parent=1 // pred_check_branch
      %43 = sbr.rel (0) target = $region17
    $region16: #{tpu_custom_call.1} parent=1 // pred_region
      _
    $region17: #{tpu_custom_call.1} parent=1 // pred_fallthru
      _
    // Predicated region
    $region18: #{tpu_custom_call.1} parent=1 // pred_check
      _
    $region19: #{tpu_custom_call.1} parent=1 // pred_check_branch
      %45 = sbr.rel (0) target = $region21
    $region20: #{tpu_custom_call.1} parent=1 // pred_region
      _
    $region21: #{tpu_custom_call.1} parent=1 // pred_fallthru
      _
    // Predicated region
    $region22: #{tpu_custom_call.1} parent=1 // pred_check
      _
    $region23: #{tpu_custom_call.1} parent=1 // pred_check_branch
      %47 = sbr.rel (0) target = $region25
    $region24: #{tpu_custom_call.1} parent=1 // pred_region
      _
    $region25: #{tpu_custom_call.1} parent=1 // pred_fallthru
      _
    %s48 = sadd.s32 0, 0
    %p49 = scmp.lt.s32.totalorder %s48, 0
    %s50 = scalar_select %p49, %s48, 0
    %s51 = smul.u32 2, %s50
    %p52 = scmp.lt.s32.totalorder %s51, 1
    %s53 = scalar_select %p52, %s51, 1
    %s54 = smul.addr %s53, 8
    %s55 = scalar_lea.vmem %s0, %s54
    %s56 = sadd.s32 0, 0
    %p57 = scmp.lt.s32.totalorder %s56, 0
    %s58 = scalar_select %p57, %s56, 0
    %s59 = smul.u32 2, %s58
    %p60 = scmp.lt.s32.totalorder %s59, 1
    %s61 = scalar_select %p60, %s59, 1
    %s62 = smul.addr %s61, 8
    %s63 = scalar_lea.vmem %s1, %s62
    %s64 = sadd.s32 0, 0
    %p65 = scmp.lt.s32.totalorder %s64, 0
    %s66 = scalar_select %p65, %s64, 0
    %s67 = smul.u32 2, %s66
    %p68 = scmp.lt.s32.totalorder %s67, 1
    %s69 = scalar_select %p68, %s67, 1
    %s70 = smul.addr %s69, 8
    %s71 = scalar_lea.vmem %s0, %s70
    %s72 = sadd.s32 0, 0
    %p73 = scmp.lt.s32.totalorder %s72, 0
    %s74 = scalar_select %p73, %s72, 0
    %s75 = smul.u32 2, %s74
    %s76 = sadd.s32 0, 0
    %p77 = scmp.lt.s32.totalorder %s76, 0
    %s78 = scalar_select %p77, %s76, 0
    %s79 = smul.u32 2, %s78
    %p80 = scmp.lt.s32.totalorder %s79, 1
    %s81 = scalar_select %p80, %s79, 1
    %s82 = smul.addr %s81, 8
    %s83 = scalar_lea.vmem %s1, %s82
    %s84 = sadd.s32 0, 0
    %p85 = scmp.lt.s32.totalorder %s84, 0
    %s86 = scalar_select %p85, %s84, 0
    %s87 = smul.u32 2, %s86
    %p88 = scmp.eq.s32.totalorder 0, 0
    // Predicated region
    $region26: #{tpu_custom_call.1} parent=1 // pred_check
      %p89 = pneg %p88
    $region27: #{tpu_custom_call.1} parent=1 // pred_check_branch
      %91 = sbr.rel (%p89) target = $region29
    $region28: #{tpu_custom_call.1} parent=1 // pred_region
      %vm92 = vcmask 49152
      %93 = vst.msk [vmem:[#allocation2] sm:$0x1] %vm92, 0.0
      %94 = vst.msk [vmem:[#allocation3] sm:$0x1] %vm92, 0.0
    $region29: #{tpu_custom_call.1} parent=1 // pred_fallthru
      _
    %v95 = vld [vmem:[%s71] sm:$0xff]
    %v96 = vld [vmem:[%s71 + $0x8] sm:$0xff]
    %v97 = vld [vmem:[%s83] sm:$0xff]
    %v98 = vld [vmem:[%s83 + $0x8] sm:$0xff]
    %v99 = vld [vmem:[%s2] sm:$0x1]
    %s100 = sadd.s32 0, 0
    %s101 = smul.u32 %s100, 16
    %v102 = vlaneseq
    %v103 = vshrl.u32 %v102, 7
    %v104 = vadd.s32 %v103, 8
    %v105 = vstv %s101
    %v106 = vadd.s32 %v103, %v105
    %v107 = vadd.s32 %v104, %v105
    %vm108 = vcmp.lt.s32.totalorder %v106, 16
    %vm109 = vcmp.lt.s32.totalorder %v107, 16
    %v110 = vsel %vm108, 1, 0
    %v111 = vsel %vm109, 1, 0
    %vm112 = vcmp.eq.s32.totalorder %v110, 1
    %vm113 = vcmp.eq.s32.totalorder %v111, 1
    %v114 = vsel %vm112, %v95, 0.0
    %v115 = vsel %vm113, %v96, 0.0
    %v116 = vlaneseq
    %v117 = vand.u32 %v116, 127
    %118 = vset.pattern.permute.xlu0 0
    %119 = vperm.xlu0 %118, %v97
    %v120 = vpop.permute.xlu0 %119
    %121 = vset.pattern.permute.xlu0 0
    %122 = vperm.xlu0 %121, %v98
    %v123 = vpop.permute.xlu0 %122
    %vm124 = vcmp.eq.s32.totalorder %v117, %v120
    %vm125 = vcmp.eq.s32.totalorder %v117, %v123
    %vm126 = vmand %vm124, %vm112
    %vm127 = vmand %vm125, %vm113
    %vm128 = vcmask 56320
    %v129 = vsel %vm128, %v114, -inf
    %130 = vmax.xlane.f32.xlu0 %v129
    %v131 = vpop.xlane.xlu0 %130
    %v132 = vsel %vm128, %v115, -inf
    %133 = vmax.xlane.f32.xlu0 %v132
    %v134 = vpop.xlane.xlu0 %133
    %v135 = vsub.f32 %v114, %v131
    %v136 = vsub.f32 %v115, %v134
    %v137 = vmul.f32 %v135, 1.442695
    %v138 = vpow.pop %v137
    %v139 = vmul.f32 %v136, 1.442695
    %v140 = vpow.pop %v139
    %v141 = vsel %vm128, %v138, 0.0
    %142 = vadd.xlane.f32.xlu0 %v141
    %v143 = vpop.xlane.xlu0 %142
    %v144 = vsel %vm128, %v140, 0.0
    %145 = vadd.xlane.f32.xlu0 %v144
    %v146 = vpop.xlane.xlu0 %145
    %v147 = vlog2.pop %v143
    %v148 = vmul.f32 %v147, 0.6931472
    %v149 = vlog2.pop %v146
    %v150 = vmul.f32 %v149, 0.6931472
    %v151 = vadd.f32 %v131, %v148
    %v152 = vadd.f32 %v134, %v150
    %v153 = vld [vmem:[#allocation2] sm:$0x1]
    %v154 = vsub.f32 %v151, %v114
    %v155 = vsub.f32 %v152, %v115
    %v157 = vlaneseq
    %v158 = vshrl.u32 %v157, 7
    %v159 = vsub.s32 0, %v158
    %v160 = vrot.slane %v99, %v159
    %v162 = vmul.f32 %v160, %v154
    %v163 = vmul.f32 %v160, %v155
    %v164 = vsel %vm126, %v162, 0.0
    %v165 = vsel %vm127, %v163, 0.0
    %v166 = vsel %vm128, %v164, 0.0
    %v167 = vsel %vm128, %v165, 0.0
    %v168 = vadd.f32 %v166, %v167
    %v169 = vrot.slane %v168, 4
    %v170 = vadd.f32 %v168, %v169
    %v171 = vrot.slane %v170, 2
    %v172 = vadd.f32 %v170, %v171
    %v173 = vrot.slane %v172, 1
    %v174 = vadd.f32 %v172, %v173
    %v175 = vadd.f32 %v153, %v174
    %vm176 = vcmask 49152
    %177 = vst.msk [vmem:[#allocation2] sm:$0x1] %vm176, %v175
    %v178 = vld [vmem:[#allocation3] sm:$0x1]
    %v179 = vsel %vm126, %v160, 0.0
    %v180 = vsel %vm127, %v160, 0.0
    %v181 = vsel %vm128, %v179, 0.0
    %v182 = vsel %vm128, %v180, 0.0
    %v183 = vadd.f32 %v181, %v182
    %v184 = vrot.slane %v183, 4
    %v185 = vadd.f32 %v183, %v184
    %v186 = vrot.slane %v185, 2
    %v187 = vadd.f32 %v185, %v186
    %v188 = vrot.slane %v187, 1
    %v189 = vadd.f32 %v187, %v188
    %v190 = vadd.f32 %v178, %v189
    %191 = vst.msk [vmem:[#allocation3] sm:$0x1] %vm176, %v190
    // Predicated region
    $region30: #{tpu_custom_call.1} parent=1 // pred_check
      %p192 = pneg %p88
    $region31: #{tpu_custom_call.1} parent=1 // pred_check_branch
      %194 = sbr.rel (%p192) target = $region33
    $region32: #{tpu_custom_call.1} parent=1 // pred_region
      %vm195 = vcmp.eq.s32.totalorder %v117, 0
      %v196 = vld [vmem:[#allocation2] sm:$0x1]
      %v197 = vsel %vm176, %v196, 0.0
      %198 = vadd.xlane.f32.xlu0 %v197
      %v199 = vpop.xlane.xlu0 %198
      %v200 = vrot.slane %v199, 4
      %v201 = vadd.f32 %v199, %v200
      %v202 = vrot.slane %v201, 2
      %v203 = vadd.f32 %v201, %v202
      %v204 = vrot.slane %v203, 1
      %v205 = vadd.f32 %v203, %v204
      %s206 = vtos %v205
      %v207 = vstv %s206
      %v208 = vsel %vm195, %v207, 0.0
      %vm209 = vcmp.eq.s32.totalorder %v117, 1
      %v210 = vld [vmem:[#allocation3] sm:$0x1]
      %v211 = vsel %vm176, %v210, 0.0
      %212 = vadd.xlane.f32.xlu0 %v211
      %v213 = vpop.xlane.xlu0 %212
      %v214 = vrot.slane %v213, 4
      %v215 = vadd.f32 %v213, %v214
      %v216 = vrot.slane %v215, 2
      %v217 = vadd.f32 %v215, %v216
      %v218 = vrot.slane %v217, 1
      %v219 = vadd.f32 %v217, %v218
      %s220 = vtos %v219
      %v221 = vstv %s220
      %v222 = vsel %vm209, %v221, 0.0
      %v223 = vadd.f32 %v208, %v222
      %224 = vst [vmem:[#allocation4] sm:$0x1] %v223
    $region33: #{tpu_custom_call.1} parent=1 // pred_fallthru
      _
    %p225 = scmp.eq.s32.totalorder 0, 0
    %p226 = pnand %p88, %p225
    %p227 = pneg %p226
    // Predicated region
    $region34: #{tpu_custom_call.1} parent=1 // pred_check
      _
    $region35: #{tpu_custom_call.1} parent=1 // pred_check_branch
      %229 = sbr.rel (%p226) target = $region37
    $region36: #{tpu_custom_call.1} parent=1 // pred_region
      %v230 = vld [vmem:[%s3] sm:$0xf]
      %v231 = vld [vmem:[%s4] sm:$0xf]
      %v232 = vld [vmem:[%s5] sm:$0x1]
      %v233 = vsub.f32 %v230, %v231
      %v234 = vand.u32 2147483647, %v233
      %v236 = vlaneseq
      %v237 = vshrl.u32 %v236, 7
      %v238 = vsub.s32 0, %v237
      %v239 = vrot.slane %v232, %v238
      %v241 = vmul.f32 %v234, %v239
      %vm242 = vcmask 1043456
      %v243 = vsel %vm242, %v241, 0.0
      %244 = vadd.xlane.f32.xlu0 %v243
      %v245 = vpop.xlane.xlu0 %244
      %v246 = vrot.slane %v245, 4
      %v247 = vadd.f32 %v245, %v246
      %v248 = vrot.slane %v247, 2
      %v249 = vadd.f32 %v247, %v248
      %v250 = vrot.slane %v249, 1
      %v251 = vadd.f32 %v249, %v250
      %s252 = vtos %v251
      %v253 = vmul.f32 %v230, 0.5
      %v255 = vrot.slane %v253, 2
      %v257 = vsub.f32 %v230, %v255
      %v258 = vadd.f32 %v230, %v255
      %v259 = vmul.f32 %v231, 0.5
      %v261 = vrot.slane %v259, 2
      %v263 = vsub.f32 %v231, %v261
      %v264 = vadd.f32 %v231, %v261
      %v265 = vsub.f32 %v258, %v257
      %v267 = vrot.slane %v265, 1
      %v269 = vmul.f32 %v265, %v267
      %v270 = vsub.f32 %v264, %v263
      %v272 = vrot.slane %v270, 1
      %v274 = vmul.f32 %v270, %v272
      %v275 = vmin.f32 %v258, %v264
      %v276 = vmax.f32 %v257, %v263
      %v277 = vsub.f32 %v275, %v276
      %v278 = vmax.f32 %v277, 0.0
      %v280 = vrot.slane %v278, 1
      %v282 = vmul.f32 %v278, %v280
      %v283 = vadd.f32 %v269, %v274
      %v284 = vsub.f32 %v283, %v282
      %v285 = vmax.f32 %v284, 1e-09
      %v286 = vrcp.pop %v285
      %v287 = vmul.f32 %v282, %v286
      %v288 = vmax.f32 %v258, %v264
      %v289 = vmin.f32 %v257, %v263
      %v290 = vsub.f32 %v288, %v289
      %v291 = vmax.f32 %v290, 0.0
      %v293 = vrot.slane %v291, 1
      %v295 = vmul.f32 %v291, %v293
      %v296 = vsub.f32 %v295, %v284
      %v297 = vmax.f32 %v295, 1e-09
      %v298 = vrcp.pop %v297
      %v299 = vmul.f32 %v296, %v298
      %v300 = vsub.f32 %v287, %v299
      %v301 = vsub.f32 1.0, %v300
      %v302 = vmul.f32 %v301, %v232
      %vm303 = vcmask 1040384
      %v304 = vsel %vm303, %v302, 0.0
      %305 = vadd.xlane.f32.xlu0 %v304
      %v306 = vpop.xlane.xlu0 %305
      %v307 = vrot.slane %v306, 4
      %v308 = vadd.f32 %v306, %v307
      %v309 = vrot.slane %v308, 2
      %v310 = vadd.f32 %v308, %v309
      %v311 = vrot.slane %v310, 1
      %v312 = vadd.f32 %v310, %v311
      %s313 = vtos %v312
      %v314 = vld [vmem:[#allocation4] sm:$0x1]
      %vm315 = vcmp.eq.s32.totalorder %v117, 2
      %v316 = vstv %s252
      %v317 = vsel %vm315, %v316, 0.0
      %v318 = vadd.f32 %v314, %v317
      %vm319 = vcmp.eq.s32.totalorder %v117, 3
      %v320 = vstv %s313
      %v321 = vsel %vm319, %v320, 0.0
      %v322 = vadd.f32 %v318, %v321
      %323 = vst [vmem:[#allocation4] sm:$0x1] %v322
    $region37: #{tpu_custom_call.1} parent=1 // pred_fallthru
      _
    // Predicated region
    $region38: #{tpu_custom_call.1} parent=1 // pred_check
      _
    $region39: #{tpu_custom_call.1} parent=1 // pred_check_branch
      %325 = sbr.rel (0) target = $region41
    $region40: #{tpu_custom_call.1} parent=1 // pred_region
      %s327 = ssub.s32 16, 16
      %328 = vsyncadd [#allocation5], %s327
      %s330 = sshll.u32 [#allocation4], 4
      %s331 = int_to_ptr.vmem [resolvable:$true] %s330
      %333 = dma.vmem_to_hbm [thread:$0]  %s331, 16, %s6, [#allocation5]
    $region41: #{tpu_custom_call.1} parent=1 // pred_fallthru
      _
    // Predicated region
    $region42: #{tpu_custom_call.1} parent=1 // pred_check
      _
    $region43: #{tpu_custom_call.1} parent=1 // pred_check_branch
      %335 = sbr.rel (0) target = $region45
    $region44: #{tpu_custom_call.1} parent=1 // pred_region
      %336 = dma.done [#allocation5], 16
    $region45: #{tpu_custom_call.1} parent=1 // pred_fallthru
      _
    %337 = vsyncpa [#allocation5], 1

</llo_original>
